<compile_context>
chip_gen: v7x
topology: tpu7x:2x2x1
jax: 0.10.0
libtpu: 0.0.40
codegen_flags: <defaults>
</compile_context>

<pallas_src>
import functools
import math

import jax
import jax.numpy as jnp
from jax import lax
from jax.experimental import pallas as pl
from jax.experimental.pallas import tpu as pltpu


def _bias_matmul_kernel(a_ref, b_ref, out_ref):
    # t_tile = einsum('mk,nk->mn', a_tile, b_tile) on the MXU, contracting the
    # shared last (K = embed_dim) axis — no per-tile XLU transpose.
    # Operands arrive bf16 (or f32); accumulate in f32 on the MXU.
    acc = lax.dot_general(
        a_ref[...],
        b_ref[...],
        dimension_numbers=(((1,), (1,)), ((), ())),
        preferred_element_type=jnp.float32,
    )
    out_ref[...] = acc.astype(out_ref.dtype)


@functools.lru_cache(maxsize=16)
def get_sinusoid_embeddings(max_positions: int, embedding_dim: int):
    # Parameter-independent, so safe to cache across calls (mirrors the
    # module's lazily-extended self.sine/self.cosine buffers).
    half_dim = embedding_dim // 2
    emb = math.log(10000.0) / half_dim
    emb = jnp.exp(jnp.arange(half_dim, dtype=jnp.float32) * -emb)
    emb = jnp.arange(max_positions, dtype=jnp.float32)[:, None] * emb[None, :]
    return jnp.sin(emb), jnp.cos(emb)


def _rotary(x, sin, cos, half):
    # x: (1, embed_dim) parameter broadcast over S rows (== alpha.expand(...)).
    x1, x2 = x[:, :half], x[:, half:]
    return jnp.concatenate([x1 * cos - x2 * sin, x2 * cos + x1 * sin], axis=1)


def _choose_tile(seq_len: int, target: int, align: int):
    """Largest multiple of `align`, <= min(target, seq_len), that divides seq_len.

    Returns None when seq_len itself is not a multiple of `align` (caller falls
    back to a full-extent block) so we never emit masked partial-tile stores.
    """
    if seq_len % align != 0:
        return None
    t = (min(target, seq_len) // align) * align
    while t > align:
        if seq_len % t == 0:
            return t
        t -= align
    return align


def rotary_relative_positional_bias(
    seq_len: int,
    alpha: jax.Array,
    beta: jax.Array,
    *,
    tile_m: int = 512,
    tile_n: int = 1024,
    compute_dtype=jnp.bfloat16,
    out_dtype=jnp.float32,
):
    """Forward pass of RotaryRelativePositionalBias.

    alpha, beta: (1, embed_dim) float32 parameters.
    Returns: (seq_len, seq_len) `out_dtype` bias matrix.
    """
    embed_dim = alpha.shape[-1]
    assert embed_dim % 2 == 0
    half = embed_dim // 2

    # Sinusoid table (cached) + hoisted rotary elementwise: O(S * embed_dim),
    # trivial next to the S^2 output.
    sin, cos = get_sinusoid_embeddings(seq_len, embed_dim)   # (S, half) each
    a = _rotary(alpha, sin, cos, half)                        # (S, embed_dim) f32
    b = _rotary(beta, sin, cos, half)                         # (S, embed_dim) f32

    # bf16 operands -> ~3x less MXU vext-slot work; accumulation stays f32.
    a_in = a.astype(compute_dtype)
    b_in = b.astype(compute_dtype)

    # Tile selection: divide seq_len exactly (no masked boundary stores) and
    # keep blocks (8, 128)-aligned; otherwise fall back to full-extent blocks.
    tm = _choose_tile(seq_len, tile_m, 8)
    if tm is None:
        tm = seq_len
    tn = _choose_tile(seq_len, tile_n, 128)
    if tn is None:
        tn = seq_len

    # v7x has 2 TensorCores: make sure the leading "parallel" grid axis has at
    # least two blocks so both get work (harmless on single-TC v5e/v6e).
    if tm == seq_len and seq_len % 16 == 0:
        tm = seq_len // 2

    grid_m = pl.cdiv(seq_len, tm)
    grid_n = pl.cdiv(seq_len, tn)

    in_isz = jnp.dtype(compute_dtype).itemsize
    out_isz = jnp.dtype(out_dtype).itemsize
    cost = pl.CostEstimate(
        flops=2 * seq_len * seq_len * embed_dim,
        transcendentals=0,
        # a is fetched once per row-block (its block index is constant over j,
        # so the revolving buffer skips re-fetch); b is re-streamed per row-block.
        bytes_accessed=(
            out_isz * seq_len * seq_len
            + in_isz * seq_len * embed_dim
            + in_isz * grid_m * seq_len * embed_dim
        ),
    )

    out = pl.pallas_call(
        _bias_matmul_kernel,
        out_shape=jax.ShapeDtypeStruct((seq_len, seq_len), out_dtype),
        grid=(grid_m, grid_n),
        in_specs=[
            pl.BlockSpec((tm, embed_dim), lambda i, j: (i, 0)),  # a rows, by i
            pl.BlockSpec((tn, embed_dim), lambda i, j: (j, 0)),  # b rows, by j
        ],
        out_specs=pl.BlockSpec((tm, tn), lambda i, j: (i, j)),
        compiler_params=pltpu.CompilerParams(
            dimension_semantics=("parallel", "parallel"),
        ),
        cost_estimate=cost,
    )(a_in, b_in)
    return out


def _reference(seq_len, alpha, beta):
    """Pure-JAX f32 reference mirroring the PyTorch module exactly."""
    embed_dim = alpha.shape[-1]
    half = embed_dim // 2
    sin, cos = get_sinusoid_embeddings(seq_len, embed_dim)

    def rotary(x):
        x1, x2 = x[:, :half], x[:, half:]
        return jnp.concatenate([x1 * cos - x2 * sin, x2 * cos + x1 * sin], axis=1)

    return jnp.einsum("mk,nk->mn", rotary(alpha), rotary(beta))


if __name__ == "__main__":
    embed_dim = 32

    key = jax.random.PRNGKey(0)
    ka, kb = jax.random.split(key)
    std = 0.02
    alpha = std * jax.random.normal(ka, (1, embed_dim), dtype=jnp.float32)
    beta = std * jax.random.normal(kb, (1, embed_dim), dtype=jnp.float32)

    # Small shape consistent with the module (single/split-block path).
    seq_len = 8
    ref = _reference(seq_len, alpha, beta)

    # f32 compute path: matches the reference exactly (module semantics).
    t32 = jax.block_until_ready(
        rotary_relative_positional_bias(seq_len, alpha, beta,
                                        compute_dtype=jnp.float32))
    assert t32.shape == (seq_len, seq_len) and t32.dtype == jnp.float32
    assert jnp.allclose(t32, ref, atol=1e-5, rtol=1e-5)

    # Default bf16-operand path: relaxed tolerance vs f32 reference.
    t16 = jax.block_until_ready(
        rotary_relative_positional_bias(seq_len, alpha, beta))
    assert t16.shape == (seq_len, seq_len) and t16.dtype == jnp.float32
    assert jnp.allclose(t16, ref, atol=3e-4, rtol=2e-2)

    # Exercise the tiled path: a seq_len where tiles divide exactly (256) and
    # one that previously produced a partial boundary tile (320) — the tile
    # selector now falls back to full-extent / divisor tiles, no masked stores.
    for s in (256, 320):
        out = jax.block_until_ready(
            rotary_relative_positional_bias(s, alpha, beta,
                                            tile_m=128, tile_n=128))
        ref_s = _reference(s, alpha, beta)
        assert out.shape == (s, s)
        assert jnp.allclose(out, ref_s, atol=3e-4, rtol=2e-2)

    print("KERNEL_OK")
</pallas_src>

<mosaic_0001>
module attributes {stable_mosaic.version = 11 : i64} {
  func.func @_bias_matmul_kernel(%arg0: i32, %arg1: i32, %arg2: memref<8x32xf32, #tpu.memory_space<vmem>>, %arg3: memref<8x32xf32, #tpu.memory_space<vmem>>, %arg4: memref<8x8xf32, #tpu.memory_space<vmem>>) attributes {dimension_semantics = [#tpu.dimension_semantics<parallel>, #tpu.dimension_semantics<parallel>], iteration_bounds = array<i64: 1, 1>, scalar_prefetch = 0 : i64, scratch_operands = 0 : i64, tpu.core_type = #tpu.core_type<tc>, window_params = [{transform_indices = @transform_0, window_bounds = array<i64: 8, 32>}, {transform_indices = @transform_1, window_bounds = array<i64: 8, 32>}, {transform_indices = @transform_2, window_bounds = array<i64: 8, 8>}]} {
    %c0 = arith.constant 0 : index
    %c0_0 = arith.constant 0 : index
    %0 = vector.load %arg2[%c0, %c0_0] : memref<8x32xf32, #tpu.memory_space<vmem>>, vector<8x32xf32>
    %c0_1 = arith.constant 0 : index
    %c0_2 = arith.constant 0 : index
    %1 = vector.load %arg3[%c0_1, %c0_2] : memref<8x32xf32, #tpu.memory_space<vmem>>, vector<8x32xf32>
    %cst = arith.constant dense<0.000000e+00> : vector<8x8xf32>
    %2 = tpu.matmul %0, %1, %cst {dimension_numbers = #tpu.dot_dimension_numbers<[1], [1], [0], [0], [0, 0, 1, 0], [], []>} : vector<8x32xf32>, vector<8x32xf32>, vector<8x8xf32> -> vector<8x8xf32>
    %c0_3 = arith.constant 0 : index
    %c0_4 = arith.constant 0 : index
    %3 = vector.load %arg4[%c0_3, %c0_4] : memref<8x8xf32, #tpu.memory_space<vmem>>, vector<8x8xf32>
    tpu.vector_store %arg4[%c0_3, %c0_4], %2 {strides = array<i32>} : memref<8x8xf32, #tpu.memory_space<vmem>>, vector<8x8xf32>,
    return
  }
  func.func @transform_0(%arg0: i32, %arg1: i32) -> (i32, i32) {
    %c0_i32 = arith.constant 0 : i32
    %c0_i32_0 = arith.constant 0 : i32
    return %arg0, %c0_i32 : i32, i32
  }
  func.func @transform_1(%arg0: i32, %arg1: i32) -> (i32, i32) {
    %c0_i32 = arith.constant 0 : i32
    %c0_i32_0 = arith.constant 0 : i32
    return %arg1, %c0_i32 : i32, i32
  }
  func.func @transform_2(%arg0: i32, %arg1: i32) -> (i32, i32) {
    %c0_i32 = arith.constant 0 : i32
    return %arg0, %arg1 : i32, i32
  }
}

</mosaic_0001>

<llo_original>
// kernel: tpu_custom_call.1
$region0: #{tpu_custom_call.1}
  #allocation0 [shape = 'u32[]', space=smem, size = 0x4, offset = 0x4, fixed_abs, tag = 'smem constant byte address 0x4 - core index']
  #allocation1 [shape = 'u32[144,128]{1,0:T(1,128)}', space=vmem, size = 0x12000, scoped, tag = 'internal scratch']
  %s0 = inlined_call_operand.hbm [shape: f32[8,32], index: 0, kind: input, shape index: {}]
  %s1 = inlined_call_operand.hbm [shape: f32[8,32], index: 1, kind: input, shape index: {}]
  %s2 = inlined_call_operand.hbm [shape: f32[8,8], index: 2, kind: output, shape index: {}]
  %s3 = sld [smem:[#allocation0]]
  $region26: #{tpu_custom_call.1} parent=0
    _
  %s5 = ssub.s32 1, %s3
  %s6 = scalar_select 0, %s5, %s3
  $region1: #{tpu_custom_call.1} parent=0
    #allocation2 [shape = 'u8[4096]{0}', space=vmem, size = 0x1000, scoped, tag = 'input window, operand 0, single buffered']
    #allocation3 [shape = 's32[1]{0}', space=sflag, size = 0x4, scoped, tag = 'scoped memory for tpu_custom_call.1']
    #allocation4 [shape = 's32[1]{0}', space=sflag, size = 0x4, scoped, tag = 'scoped memory for tpu_custom_call.1']
    #allocation5 [shape = 'u8[4096]{0}', space=vmem, size = 0x1000, scoped, tag = 'input window, operand 1, single buffered']
    #allocation6 [shape = 's32[1]{0}', space=sflag, size = 0x4, scoped, tag = 'scoped memory for tpu_custom_call.1']
    #allocation7 [shape = 'u8[4096]{0}', space=vmem, size = 0x1000, scoped, tag = 'output window, operand 0, single buffered']
    %7 = vsyncpa [#allocation3], 0
    %8 = vsyncpa [#allocation6], 0
    %9 = vsyncpa [#allocation4], 0
    // Predicated region
    $region2: #{tpu_custom_call.1} parent=1 // pred_check
      _
    $region3: #{tpu_custom_call.1} parent=1 // pred_check_branch
      %11 = sbr.rel (0) target = $region5
    $region4: #{tpu_custom_call.1} parent=1 // pred_region
      %s13 = ssub.s32 128, 128
      %14 = vsyncadd [#allocation3], %s13
      %s16 = sshll.u32 [#allocation2], 4
      %s17 = int_to_ptr.vmem [resolvable:$true] %s16
      %19 = dma.hbm_to_vmem [thread:$0]  %s0, 128, %s17, [#allocation3]
    $region5: #{tpu_custom_call.1} parent=1 // pred_fallthru
      _
    // Predicated region
    $region6: #{tpu_custom_call.1} parent=1 // pred_check
      _
    $region7: #{tpu_custom_call.1} parent=1 // pred_check_branch
      %21 = sbr.rel (0) target = $region9
    $region8: #{tpu_custom_call.1} parent=1 // pred_region
      %s23 = ssub.s32 128, 128
      %24 = vsyncadd [#allocation6], %s23
      %s26 = sshll.u32 [#allocation5], 4
      %s27 = int_to_ptr.vmem [resolvable:$true] %s26
      %29 = dma.hbm_to_vmem [thread:$0]  %s1, 128, %s27, [#allocation6]
    $region9: #{tpu_custom_call.1} parent=1 // pred_fallthru
      _
    // Predicated region
    $region10: #{tpu_custom_call.1} parent=1 // pred_check
      _
    $region11: #{tpu_custom_call.1} parent=1 // pred_check_branch
      %31 = sbr.rel (0) target = $region13
    $region12: #{tpu_custom_call.1} parent=1 // pred_region
      %32 = dma.done [#allocation3], 128
    $region13: #{tpu_custom_call.1} parent=1 // pred_fallthru
      _
    // Predicated region
    $region14: #{tpu_custom_call.1} parent=1 // pred_check
      _
    $region15: #{tpu_custom_call.1} parent=1 // pred_check_branch
      %34 = sbr.rel (0) target = $region17
    $region16: #{tpu_custom_call.1} parent=1 // pred_region
      %35 = dma.done [#allocation6], 128
    $region17: #{tpu_custom_call.1} parent=1 // pred_fallthru
      _
    %v36 = vld [vmem:[#allocation2] sm:$0xff]
    %v37 = vld [vmem:[#allocation5] sm:$0xff]
    %vm38 = vcmask 261120
    %v40 = vsel %vm38, %v36, 0
    %v43 = vsel %vm38, %v37, 0
    %45 = vmatprep.subr.mxu0 0.0
    %46 = vmatpush1.xpose.msra.mxu0 %v43
    %47 = vmatprep.subr.mxu0 0.0
    %48 = vmatpush1.xpose.msra.mxu0 0.0
    %49 = vmatprep.subr.mxu0 0.0
    %50 = vmatpush1.xpose.msra.mxu0 0.0
    %51 = vmatprep.subr.mxu0 0.0
    %52 = vmatpush1.xpose.msra.mxu0 0.0
    %53 = vmatprep.subr.mxu0 0.0
    %54 = vmatpush1.xpose.msra.mxu0 0.0
    %55 = vmatprep.subr.mxu0 0.0
    %56 = vmatpush1.xpose.msra.mxu0 0.0
    %57 = vmatprep.subr.mxu0 0.0
    %58 = vmatpush1.xpose.msra.mxu0 0.0
    %59 = vmatprep.subr.mxu0 0.0
    %60 = vmatpush1.xpose.msra.mxu0 0.0
    %61 = vmatprep.subr.mxu0 0.0
    %62 = vmatpush1.xpose.msra.mxu0 0.0
    %63 = vmatprep.subr.mxu0 0.0
    %64 = vmatpush1.xpose.msra.mxu0 0.0
    %65 = vmatprep.subr.mxu0 0.0
    %66 = vmatpush1.xpose.msra.mxu0 0.0
    %67 = vmatprep.subr.mxu0 0.0
    %68 = vmatpush1.xpose.msra.mxu0 0.0
    %69 = vmatprep.subr.mxu0 0.0
    %70 = vmatpush1.xpose.msra.mxu0 0.0
    %71 = vmatprep.subr.mxu0 0.0
    %72 = vmatpush1.xpose.msra.mxu0 0.0
    %73 = vmatprep.subr.mxu0 0.0
    %74 = vmatpush1.xpose.msra.mxu0 0.0
    %75 = vmatprep.subr.mxu0 0.0
    %76 = vmatpush1.xpose.msra.mxu0 0.0
    %77 = vmatprep.subr.mxu0 0.0
    %78 = vmatpush1.xpose.msra.mxu0 0.0
    %79 = vmatprep.subr.mxu0 0.0
    %80 = vmatpush1.xpose.msra.mxu0 0.0
    %81 = vmatprep.subr.mxu0 0.0
    %82 = vmatpush1.xpose.msra.mxu0 0.0
    %83 = vmatprep.subr.mxu0 0.0
    %84 = vmatpush1.xpose.msra.mxu0 0.0
    %85 = vmatprep.subr.mxu0 0.0
    %86 = vmatpush1.xpose.msra.mxu0 0.0
    %87 = vmatprep.subr.mxu0 0.0
    %88 = vmatpush1.xpose.msra.mxu0 0.0
    %89 = vmatprep.subr.mxu0 0.0
    %90 = vmatpush1.xpose.msra.mxu0 0.0
    %91 = vmatprep.subr.mxu0 0.0
    %92 = vmatpush1.xpose.msra.mxu0 0.0
    %93 = vmatprep.subr.mxu0 0.0
    %94 = vmatpush1.xpose.msra.mxu0 0.0
    %95 = vmatprep.subr.mxu0 0.0
    %96 = vmatpush1.xpose.msra.mxu0 0.0
    %97 = vmatprep.subr.mxu0 0.0
    %98 = vmatpush1.xpose.msra.mxu0 0.0
    %99 = vmatprep.subr.mxu0 0.0
    %100 = vmatpush1.xpose.msra.mxu0 0.0
    %101 = vmatprep.subr.mxu0 0.0
    %102 = vmatpush1.xpose.msra.mxu0 0.0
    %103 = vmatprep.subr.mxu0 0.0
    %104 = vmatpush1.xpose.msra.mxu0 0.0
    %105 = vmatprep.subr.mxu0 0.0
    %106 = vmatpush1.xpose.msra.mxu0 0.0
    %107 = vmatprep.subr.mxu0 0.0
    %108 = vmatpush1.xpose.msra.mxu0 0.0
    %109 = vmatprep.mubr.f32.mxu0 0.0
    %110 = vmatmul.mubr.f32.gmra.mrb[0].mxu0 %v40
    %v111 = vpop.f32.mrb[0].mxu0
    %v112 = vadd.f32 0.0, %v111
    %v113 = vpop.f32.mrb[0].mxu0
    %114 = vdwg.mxu0
    %vm115 = vcmask 64512
    %116 = vst.msk [vmem:[#allocation7] sm:$0xff] %vm115, %v112
    // Predicated region
    $region18: #{tpu_custom_call.1} parent=1 // pred_check
      _
    $region19: #{tpu_custom_call.1} parent=1 // pred_check_branch
      %118 = sbr.rel (0) target = $region21
    $region20: #{tpu_custom_call.1} parent=1 // pred_region
      %s120 = ssub.s32 128, 128
      %121 = vsyncadd [#allocation4], %s120
      %s123 = sshll.u32 [#allocation7], 4
      %s124 = int_to_ptr.vmem [resolvable:$true] %s123
      %126 = dma.vmem_to_hbm [thread:$0]  %s124, 128, %s2, [#allocation4]
    $region21: #{tpu_custom_call.1} parent=1 // pred_fallthru
      _
    // Predicated region
    $region22: #{tpu_custom_call.1} parent=1 // pred_check
      _
    $region23: #{tpu_custom_call.1} parent=1 // pred_check_branch
      %128 = sbr.rel (0) target = $region25
    $region24: #{tpu_custom_call.1} parent=1 // pred_region
      %129 = dma.done [#allocation4], 128
    $region25: #{tpu_custom_call.1} parent=1 // pred_fallthru
      _
    %130 = vsyncpa [#allocation3], 1
    %131 = vsyncpa [#allocation6], 1
    %132 = vsyncpa [#allocation4], 1

</llo_original>
